<compile_context>
chip_gen: v7x
topology: tpu7x:2x2x1
jax: 0.10.0
libtpu: 0.0.40
codegen_flags: <defaults>
</compile_context>

<pallas_src>
import jax
import jax.numpy as jnp
import numpy as np
from jax.experimental import pallas as pl
from jax.experimental.pallas import tpu as pltpu

# deterministic "conf" (default_conf of the module)
NLL_BALANCING = 0.5
GAMMA_F = 0.0  # accepted by weight_loss but unused in its math

_MAX_TILE_M = 256  # rows per tile when M is large (multiple of 8)


# ----------------------------- Pallas kernel ------------------------------ #
def weight_loss_pallas(log_assignment, weights, nll_balancing=NLL_BALANCING):
    """Pallas implementation of weight_loss + nll balancing. Returns (B,) arrays."""
    B, M, N = log_assignment.shape
    m = M - 1                       # index of the last ("unmatched") row, static
    tile_m = M if M <= _MAX_TILE_M else _MAX_TILE_M
    T = pl.cdiv(M, tile_m)

    def kernel(la_ref, w_ref, out_ref,
               acc_w_pos, acc_w_neg0, acc_w_neg1,
               acc_l_pos, acc_l_neg0, acc_l_neg1):
        t = pl.program_id(1)

        @pl.when(t == 0)
        def _init():
            for acc in (acc_w_pos, acc_w_neg0, acc_w_neg1,
                        acc_l_pos, acc_l_neg0, acc_l_neg1):
                acc[...] = jnp.zeros_like(acc)

        la = la_ref[...].astype(jnp.float32)       # (tile_m, N)
        w = w_ref[...].astype(jnp.float32)         # (tile_m, N)
        loss = la * w

        # Per-row reductions: one full-width lane reduce + one single-lane
        # slice; "main" (columns 0..N-2) = total - last column.
        w_total = jnp.sum(w, axis=-1, keepdims=True)       # (tile_m, 1)
        l_total = jnp.sum(loss, axis=-1, keepdims=True)    # (tile_m, 1)
        w_last = w[:, N - 1:]                              # (tile_m, 1)
        l_last = loss[:, N - 1:]                           # (tile_m, 1)
        w_main = w_total - w_last
        l_main = l_total - l_last

        # Global row ids of this tile (also masks ragged padding rows when
        # M % tile_m != 0 -- Pallas pads out-of-range rows with garbage,
        # which we zero out here).
        gid = t * tile_m + jax.lax.broadcasted_iota(jnp.int32, (tile_m, 1), 0)
        is_main = gid < m           # rows 0..m-1
        is_last = gid == m          # the final (unmatched) row

        def rsum(x):                # (tile_m, 1) -> (1, 1)
            return jnp.sum(x, axis=0, keepdims=True)

        acc_w_pos[...] += rsum(jnp.where(is_main, w_main, 0.0))
        acc_l_pos[...] += rsum(jnp.where(is_main, l_main, 0.0))
        acc_w_neg0[...] += rsum(jnp.where(is_main, w_last, 0.0))
        acc_l_neg0[...] += rsum(jnp.where(is_main, l_last, 0.0))
        acc_w_neg1[...] += rsum(jnp.where(is_last, w_main, 0.0))
        acc_l_neg1[...] += rsum(jnp.where(is_last, l_main, 0.0))

        @pl.when(t == pl.num_programs(1) - 1)
        def _finalize():
            num_pos = jnp.maximum(acc_w_pos[...], 1.0)       # (1, 1)
            num_neg0 = jnp.maximum(acc_w_neg0[...], 1.0)
            num_neg1 = jnp.maximum(acc_w_neg1[...], 1.0)
            nll_pos = -acc_l_pos[...] / num_pos
            nll_neg = -(acc_l_neg0[...] + acc_l_neg1[...]) / (num_neg0 + num_neg1)
            nll = nll_balancing * nll_pos + (1.0 - nll_balancing) * nll_neg
            num_neg = 0.5 * (num_neg0 + num_neg1)

            # Pack the five scalars into one lane-dense (1, 128) store.
            lane = jax.lax.broadcasted_iota(jnp.int32, (1, 128), 1)
            packed = jnp.zeros((1, 128), jnp.float32)
            for k, v in enumerate((nll, nll_pos, nll_neg, num_pos, num_neg)):
                packed = jnp.where(lane == k, v, packed)
            out_ref[...] = packed

    out = pl.pallas_call(
        kernel,
        out_shape=jax.ShapeDtypeStruct((B, 1, 128), jnp.float32),
        grid_spec=pltpu.PrefetchScalarGridSpec(
            num_scalar_prefetch=0,
            grid=(B, T),
            in_specs=[pl.BlockSpec((None, tile_m, N), lambda b, t: (b, t, 0)),
                      pl.BlockSpec((None, tile_m, N), lambda b, t: (b, t, 0))],
            out_specs=pl.BlockSpec((None, 1, 128), lambda b, t: (b, 0, 0)),
            scratch_shapes=[pltpu.VMEM((1, 1), jnp.float32) for _ in range(6)],
        ),
        compiler_params=pltpu.CompilerParams(
            dimension_semantics=("parallel", "arbitrary"),
            vmem_limit_bytes=32 << 20),
    )(log_assignment, weights)

    res = out[:, 0, :5]
    return res[:, 0], res[:, 1], res[:, 2], res[:, 3], res[:, 4]


# ------------------------- glue (NLLLoss.nll_loss) ------------------------- #
def build_weights(log_assignment, gt_assignment, gt_matches0, gt_matches1):
    """JAX equivalent of NLLLoss.nll_loss (0/1 weight-matrix construction)."""
    m = gt_matches0.shape[-1]
    n = gt_matches1.shape[-1]
    B, M, N = log_assignment.shape
    dt = log_assignment.dtype                      # keep the kernel read narrow
    positive = gt_assignment[:, 0].astype(dt)      # (B, p, q), p<=m, q<=n
    p, q = positive.shape[1], positive.shape[2]
    neg0 = (gt_matches0[:, 0] == -1).astype(dt)    # (B, m)
    neg1 = (gt_matches1[:, 0] == -1).astype(dt)    # (B, n)
    weights = jnp.zeros((B, M, N), dt)
    weights = weights.at[:, :p, :q].set(positive)  # zero-padded to (m, n) region
    weights = weights.at[:, :m, -1].set(neg0)
    weights = weights.at[:, -1, :n].set(neg1)
    return weights


def nll_loss_forward(pred, data, weights=None):
    """Mirrors NLLLoss.forward."""
    log_assignment = pred["log_assignment"]
    if weights is None:
        weights = build_weights(log_assignment, data["gt_assignment"],
                                data["gt_matches0"], data["gt_matches1"])
    nll, nll_pos, nll_neg, num_pos, num_neg = weight_loss_pallas(
        log_assignment, weights)
    summaries = {
        "assignment_nll": nll,
        "nll_pos": nll_pos,
        "nll_neg": nll_neg,
        "num_matchable": num_pos,
        "num_unmatchable": num_neg,
    }
    return nll, weights, summaries


# ------------------------------ reference --------------------------------- #
def weight_loss_ref(la, w):
    la = la.astype(jnp.float32)
    w = w.astype(jnp.float32)
    B, M, N = la.shape
    m, n = M - 1, N - 1
    ls = la * w
    num_neg0 = jnp.maximum(w[:, :m, -1].sum(-1), 1.0)
    num_neg1 = jnp.maximum(w[:, -1, :n].sum(-1), 1.0)
    num_pos = jnp.maximum(w[:, :m, :n].sum((-1, -2)), 1.0)
    nll_pos = -ls[:, :m, :n].sum((-1, -2)) / num_pos
    nll_neg = (-(ls[:, :m, -1].sum(-1) + ls[:, -1, :n].sum(-1))
               / (num_neg0 + num_neg1))
    nll = NLL_BALANCING * nll_pos + (1.0 - NLL_BALANCING) * nll_neg
    return nll, nll_pos, nll_neg, num_pos, 0.5 * (num_neg0 + num_neg1)


# -------------------------------- main ------------------------------------ #
if __name__ == "__main__":
    key = jax.random.PRNGKey(0)
    B, m, n = 2, 15, 31          # keypoints per image; log_assignment is (B, m+1, n+1)
    M, N = m + 1, n + 1
    k1, k2, k3, k4 = jax.random.split(key, 4)

    log_assignment = jax.nn.log_softmax(
        jax.random.normal(k1, (B, M, N), dtype=jnp.float32), axis=-1)
    # ground-truth assignment may be smaller than (m, n); it gets zero-padded
    gt_assignment = jax.random.uniform(k2, (B, 1, 12, 20)) > 0.8
    gt_matches0 = jax.random.randint(k3, (B, 1, m), -1, n)
    gt_matches1 = jax.random.randint(k4, (B, 1, n), -1, m)

    pred = {"log_assignment": log_assignment}
    data = {"gt_assignment": gt_assignment,
            "gt_matches0": gt_matches0,
            "gt_matches1": gt_matches1}

    nll, weights, summaries = nll_loss_forward(pred, data)
    jax.block_until_ready((nll, weights, summaries))

    # correctness check against a pure-JAX reference of weight_loss
    ref = weight_loss_ref(log_assignment, weights)
    got = (nll, summaries["nll_pos"], summaries["nll_neg"],
           summaries["num_matchable"], summaries["num_unmatchable"])
    for g, r in zip(got, ref):
        assert np.allclose(np.asarray(g, np.float32), np.asarray(r, np.float32),
                           rtol=1e-5, atol=1e-5), "Pallas kernel does not match reference"
    print("KERNEL_OK")
</pallas_src>

<mosaic_0001>
module attributes {stable_mosaic.version = 11 : i64} {
  func.func @kernel(%arg0: i32, %arg1: i32, %arg2: memref<1x16x32xf32, #tpu.memory_space<vmem>>, %arg3: memref<1x16x32xf32, #tpu.memory_space<vmem>>, %arg4: memref<1x1x128xf32, #tpu.memory_space<vmem>>, %arg5: memref<1x1xf32, #tpu.memory_space<vmem>>, %arg6: memref<1x1xf32, #tpu.memory_space<vmem>>, %arg7: memref<1x1xf32, #tpu.memory_space<vmem>>, %arg8: memref<1x1xf32, #tpu.memory_space<vmem>>, %arg9: memref<1x1xf32, #tpu.memory_space<vmem>>, %arg10: memref<1x1xf32, #tpu.memory_space<vmem>>) attributes {dimension_semantics = [#tpu.dimension_semantics<parallel>, #tpu.dimension_semantics<arbitrary>], iteration_bounds = array<i64: 2, 1>, scalar_prefetch = 0 : i64, scratch_operands = 6 : i64, tpu.core_type = #tpu.core_type<tc>, window_params = [{transform_indices = @transform_0, window_bounds = array<i64: 1, 16, 32>}, {transform_indices = @transform_1, window_bounds = array<i64: 1, 16, 32>}, {transform_indices = @transform_2, window_bounds = array<i64: 1, 1, 128>}]} {
    %c0_i32 = arith.constant 0 : i32
    %0 = arith.cmpi eq, %arg1, %c0_i32 : i32
    %1 = arith.extui %0 : i1 to i32
    %c0_i32_0 = arith.constant 0 : i32
    %2 = arith.cmpi ne, %1, %c0_i32_0 : i32
    scf.if %2 {
      %cst_46 = arith.constant 0.000000e+00 : f32
      %69 = vector.broadcast %cst_46 : f32 to vector<1x1xf32>
      %c0_47 = arith.constant 0 : index
      %c0_48 = arith.constant 0 : index
      %70 = vector.load %arg5[%c0_47, %c0_48] : memref<1x1xf32, #tpu.memory_space<vmem>>, vector<1x1xf32>
      tpu.vector_store %arg5[%c0_47, %c0_48], %69 {strides = array<i32>} : memref<1x1xf32, #tpu.memory_space<vmem>>, vector<1x1xf32>,
      %cst_49 = arith.constant 0.000000e+00 : f32
      %71 = vector.broadcast %cst_49 : f32 to vector<1x1xf32>
      %c0_50 = arith.constant 0 : index
      %c0_51 = arith.constant 0 : index
      %72 = vector.load %arg6[%c0_50, %c0_51] : memref<1x1xf32, #tpu.memory_space<vmem>>, vector<1x1xf32>
      tpu.vector_store %arg6[%c0_50, %c0_51], %71 {strides = array<i32>} : memref<1x1xf32, #tpu.memory_space<vmem>>, vector<1x1xf32>,
      %cst_52 = arith.constant 0.000000e+00 : f32
      %73 = vector.broadcast %cst_52 : f32 to vector<1x1xf32>
      %c0_53 = arith.constant 0 : index
      %c0_54 = arith.constant 0 : index
      %74 = vector.load %arg7[%c0_53, %c0_54] : memref<1x1xf32, #tpu.memory_space<vmem>>, vector<1x1xf32>
      tpu.vector_store %arg7[%c0_53, %c0_54], %73 {strides = array<i32>} : memref<1x1xf32, #tpu.memory_space<vmem>>, vector<1x1xf32>,
      %cst_55 = arith.constant 0.000000e+00 : f32
      %75 = vector.broadcast %cst_55 : f32 to vector<1x1xf32>
      %c0_56 = arith.constant 0 : index
      %c0_57 = arith.constant 0 : index
      %76 = vector.load %arg8[%c0_56, %c0_57] : memref<1x1xf32, #tpu.memory_space<vmem>>, vector<1x1xf32>
      tpu.vector_store %arg8[%c0_56, %c0_57], %75 {strides = array<i32>} : memref<1x1xf32, #tpu.memory_space<vmem>>, vector<1x1xf32>,
      %cst_58 = arith.constant 0.000000e+00 : f32
      %77 = vector.broadcast %cst_58 : f32 to vector<1x1xf32>
      %c0_59 = arith.constant 0 : index
      %c0_60 = arith.constant 0 : index
      %78 = vector.load %arg9[%c0_59, %c0_60] : memref<1x1xf32, #tpu.memory_space<vmem>>, vector<1x1xf32>
      tpu.vector_store %arg9[%c0_59, %c0_60], %77 {strides = array<i32>} : memref<1x1xf32, #tpu.memory_space<vmem>>, vector<1x1xf32>,
      %cst_61 = arith.constant 0.000000e+00 : f32
      %79 = vector.broadcast %cst_61 : f32 to vector<1x1xf32>
      %c0_62 = arith.constant 0 : index
      %c0_63 = arith.constant 0 : index
      %80 = vector.load %arg10[%c0_62, %c0_63] : memref<1x1xf32, #tpu.memory_space<vmem>>, vector<1x1xf32>
      tpu.vector_store %arg10[%c0_62, %c0_63], %79 {strides = array<i32>} : memref<1x1xf32, #tpu.memory_space<vmem>>, vector<1x1xf32>,
    } else {
    }
    %c0 = arith.constant 0 : index
    %c0_1 = arith.constant 0 : index
    %c0_2 = arith.constant 0 : index
    %3 = vector.load %arg2[%c0, %c0_1, %c0_2] : memref<1x16x32xf32, #tpu.memory_space<vmem>>, vector<1x16x32xf32>
    %4 = vector.shape_cast %3 : vector<1x16x32xf32> to vector<16x32xf32>
    %c0_3 = arith.constant 0 : index
    %c0_4 = arith.constant 0 : index
    %c0_5 = arith.constant 0 : index
    %5 = vector.load %arg3[%c0_3, %c0_4, %c0_5] : memref<1x16x32xf32, #tpu.memory_space<vmem>>, vector<1x16x32xf32>
    %6 = vector.shape_cast %5 : vector<1x16x32xf32> to vector<16x32xf32>
    %7 = arith.mulf %4, %6 : vector<16x32xf32>
    %cst = arith.constant dense<0.000000e+00> : vector<16xf32>
    %8 = vector.multi_reduction <add>, %6, %cst [1] : vector<16x32xf32> to vector<16xf32>
    %9 = vector.shape_cast %8 : vector<16xf32> to vector<16x1xf32>
    %cst_6 = arith.constant dense<0.000000e+00> : vector<16xf32>
    %10 = vector.multi_reduction <add>, %7, %cst_6 [1] : vector<16x32xf32> to vector<16xf32>
    %11 = vector.shape_cast %10 : vector<16xf32> to vector<16x1xf32>
    %12 = vector.extract_strided_slice %6 {offsets = [0, 31], sizes = [16, 1], strides = [1, 1]} : vector<16x32xf32> to vector<16x1xf32>
    %13 = vector.extract_strided_slice %7 {offsets = [0, 31], sizes = [16, 1], strides = [1, 1]} : vector<16x32xf32> to vector<16x1xf32>
    %14 = arith.subf %9, %12 : vector<16x1xf32>
    %15 = arith.subf %11, %13 : vector<16x1xf32>
    %c16_i32 = arith.constant 16 : i32
    %16 = arith.muli %arg1, %c16_i32 : i32
    %17 = tpu.iota {dimensions = array<i32: 0>} : vector<16x1xi32>
    %18 = vector.broadcast %16 : i32 to vector<16x1xi32>
    %19 = arith.addi %18, %17 : vector<16x1xi32>
    %c15_i32 = arith.constant 15 : i32
    %20 = vector.broadcast %c15_i32 : i32 to vector<16x1xi32>
    %21 = arith.cmpi slt, %19, %20 : vector<16x1xi32>
    %c15_i32_7 = arith.constant 15 : i32
    %22 = vector.broadcast %c15_i32_7 : i32 to vector<16x1xi32>
    %23 = arith.cmpi eq, %19, %22 : vector<16x1xi32>
    %c0_8 = arith.constant 0 : index
    %c0_9 = arith.constant 0 : index
    %24 = vector.load %arg5[%c0_8, %c0_9] : memref<1x1xf32, #tpu.memory_space<vmem>>, vector<1x1xf32>
    %cst_10 = arith.constant 0.000000e+00 : f32
    %25 = vector.broadcast %cst_10 : f32 to vector<16x1xf32>
    %26 = arith.select %21, %14, %25 : vector<16x1xi1>, vector<16x1xf32>
    %cst_11 = arith.constant dense<0.000000e+00> : vector<1xf32>
    %27 = vector.multi_reduction <add>, %26, %cst_11 [0] : vector<16x1xf32> to vector<1xf32>
    %28 = vector.shape_cast %27 : vector<1xf32> to vector<1x1xf32>
    %29 = arith.addf %24, %28 : vector<1x1xf32>
    %c0_12 = arith.constant 0 : index
    %c0_13 = arith.constant 0 : index
    %30 = vector.load %arg5[%c0_12, %c0_13] : memref<1x1xf32, #tpu.memory_space<vmem>>, vector<1x1xf32>
    tpu.vector_store %arg5[%c0_12, %c0_13], %29 {strides = array<i32>} : memref<1x1xf32, #tpu.memory_space<vmem>>, vector<1x1xf32>,
    %c0_14 = arith.constant 0 : index
    %c0_15 = arith.constant 0 : index
    %31 = vector.load %arg8[%c0_14, %c0_15] : memref<1x1xf32, #tpu.memory_space<vmem>>, vector<1x1xf32>
    %cst_16 = arith.constant 0.000000e+00 : f32
    %32 = vector.broadcast %cst_16 : f32 to vector<16x1xf32>
    %33 = arith.select %21, %15, %32 : vector<16x1xi1>, vector<16x1xf32>
    %cst_17 = arith.constant dense<0.000000e+00> : vector<1xf32>
    %34 = vector.multi_reduction <add>, %33, %cst_17 [0] : vector<16x1xf32> to vector<1xf32>
    %35 = vector.shape_cast %34 : vector<1xf32> to vector<1x1xf32>
    %36 = arith.addf %31, %35 : vector<1x1xf32>
    %c0_18 = arith.constant 0 : index
    %c0_19 = arith.constant 0 : index
    %37 = vector.load %arg8[%c0_18, %c0_19] : memref<1x1xf32, #tpu.memory_space<vmem>>, vector<1x1xf32>
    tpu.vector_store %arg8[%c0_18, %c0_19], %36 {strides = array<i32>} : memref<1x1xf32, #tpu.memory_space<vmem>>, vector<1x1xf32>,
    %c0_20 = arith.constant 0 : index
    %c0_21 = arith.constant 0 : index
    %38 = vector.load %arg6[%c0_20, %c0_21] : memref<1x1xf32, #tpu.memory_space<vmem>>, vector<1x1xf32>
    %cst_22 = arith.constant 0.000000e+00 : f32
    %39 = vector.broadcast %cst_22 : f32 to vector<16x1xf32>
    %40 = arith.select %21, %12, %39 : vector<16x1xi1>, vector<16x1xf32>
    %cst_23 = arith.constant dense<0.000000e+00> : vector<1xf32>
    %41 = vector.multi_reduction <add>, %40, %cst_23 [0] : vector<16x1xf32> to vector<1xf32>
    %42 = vector.shape_cast %41 : vector<1xf32> to vector<1x1xf32>
    %43 = arith.addf %38, %42 : vector<1x1xf32>
    %c0_24 = arith.constant 0 : index
    %c0_25 = arith.constant 0 : index
    %44 = vector.load %arg6[%c0_24, %c0_25] : memref<1x1xf32, #tpu.memory_space<vmem>>, vector<1x1xf32>
    tpu.vector_store %arg6[%c0_24, %c0_25], %43 {strides = array<i32>} : memref<1x1xf32, #tpu.memory_space<vmem>>, vector<1x1xf32>,
    %c0_26 = arith.constant 0 : index
    %c0_27 = arith.constant 0 : index
    %45 = vector.load %arg9[%c0_26, %c0_27] : memref<1x1xf32, #tpu.memory_space<vmem>>, vector<1x1xf32>
    %cst_28 = arith.constant 0.000000e+00 : f32
    %46 = vector.broadcast %cst_28 : f32 to vector<16x1xf32>
    %47 = arith.select %21, %13, %46 : vector<16x1xi1>, vector<16x1xf32>
    %cst_29 = arith.constant dense<0.000000e+00> : vector<1xf32>
    %48 = vector.multi_reduction <add>, %47, %cst_29 [0] : vector<16x1xf32> to vector<1xf32>
    %49 = vector.shape_cast %48 : vector<1xf32> to vector<1x1xf32>
    %50 = arith.addf %45, %49 : vector<1x1xf32>
    %c0_30 = arith.constant 0 : index
    %c0_31 = arith.constant 0 : index
    %51 = vector.load %arg9[%c0_30, %c0_31] : memref<1x1xf32, #tpu.memory_space<vmem>>, vector<1x1xf32>
    tpu.vector_store %arg9[%c0_30, %c0_31], %50 {strides = array<i32>} : memref<1x1xf32, #tpu.memory_space<vmem>>, vector<1x1xf32>,
    %c0_32 = arith.constant 0 : index
    %c0_33 = arith.constant 0 : index
    %52 = vector.load %arg7[%c0_32, %c0_33] : memref<1x1xf32, #tpu.memory_space<vmem>>, vector<1x1xf32>
    %cst_34 = arith.constant 0.000000e+00 : f32
    %53 = vector.broadcast %cst_34 : f32 to vector<16x1xf32>
    %54 = arith.select %23, %14, %53 : vector<16x1xi1>, vector<16x1xf32>
    %cst_35 = arith.constant dense<0.000000e+00> : vector<1xf32>
    %55 = vector.multi_reduction <add>, %54, %cst_35 [0] : vector<16x1xf32> to vector<1xf32>
    %56 = vector.shape_cast %55 : vector<1xf32> to vector<1x1xf32>
    %57 = arith.addf %52, %56 : vector<1x1xf32>
    %c0_36 = arith.constant 0 : index
    %c0_37 = arith.constant 0 : index
    %58 = vector.load %arg7[%c0_36, %c0_37] : memref<1x1xf32, #tpu.memory_space<vmem>>, vector<1x1xf32>
    tpu.vector_store %arg7[%c0_36, %c0_37], %57 {strides = array<i32>} : memref<1x1xf32, #tpu.memory_space<vmem>>, vector<1x1xf32>,
    %c0_38 = arith.constant 0 : index
    %c0_39 = arith.constant 0 : index
    %59 = vector.load %arg10[%c0_38, %c0_39] : memref<1x1xf32, #tpu.memory_space<vmem>>, vector<1x1xf32>
    %cst_40 = arith.constant 0.000000e+00 : f32
    %60 = vector.broadcast %cst_40 : f32 to vector<16x1xf32>
    %61 = arith.select %23, %15, %60 : vector<16x1xi1>, vector<16x1xf32>
    %cst_41 = arith.constant dense<0.000000e+00> : vector<1xf32>
    %62 = vector.multi_reduction <add>, %61, %cst_41 [0] : vector<16x1xf32> to vector<1xf32>
    %63 = vector.shape_cast %62 : vector<1xf32> to vector<1x1xf32>
    %64 = arith.addf %59, %63 : vector<1x1xf32>
    %c0_42 = arith.constant 0 : index
    %c0_43 = arith.constant 0 : index
    %65 = vector.load %arg10[%c0_42, %c0_43] : memref<1x1xf32, #tpu.memory_space<vmem>>, vector<1x1xf32>
    tpu.vector_store %arg10[%c0_42, %c0_43], %64 {strides = array<i32>} : memref<1x1xf32, #tpu.memory_space<vmem>>, vector<1x1xf32>,
    %c0_i32_44 = arith.constant 0 : i32
    %66 = arith.cmpi eq, %arg1, %c0_i32_44 : i32
    %67 = arith.extui %66 : i1 to i32
    %c0_i32_45 = arith.constant 0 : i32
    %68 = arith.cmpi ne, %67, %c0_i32_45 : i32
    scf.if %68 {
      %c0_46 = arith.constant 0 : index
      %c0_47 = arith.constant 0 : index
      %69 = vector.load %arg5[%c0_46, %c0_47] : memref<1x1xf32, #tpu.memory_space<vmem>>, vector<1x1xf32>
      %cst_48 = arith.constant 1.000000e+00 : f32
      %70 = vector.broadcast %cst_48 : f32 to vector<1x1xf32>
      %71 = arith.maximumf %69, %70 : vector<1x1xf32>
      %c0_49 = arith.constant 0 : index
      %c0_50 = arith.constant 0 : index
      %72 = vector.load %arg6[%c0_49, %c0_50] : memref<1x1xf32, #tpu.memory_space<vmem>>, vector<1x1xf32>
      %cst_51 = arith.constant 1.000000e+00 : f32
      %73 = vector.broadcast %cst_51 : f32 to vector<1x1xf32>
      %74 = arith.maximumf %72, %73 : vector<1x1xf32>
      %c0_52 = arith.constant 0 : index
      %c0_53 = arith.constant 0 : index
      %75 = vector.load %arg7[%c0_52, %c0_53] : memref<1x1xf32, #tpu.memory_space<vmem>>, vector<1x1xf32>
      %cst_54 = arith.constant 1.000000e+00 : f32
      %76 = vector.broadcast %cst_54 : f32 to vector<1x1xf32>
      %77 = arith.maximumf %75, %76 : vector<1x1xf32>
      %c0_55 = arith.constant 0 : index
      %c0_56 = arith.constant 0 : index
      %78 = vector.load %arg8[%c0_55, %c0_56] : memref<1x1xf32, #tpu.memory_space<vmem>>, vector<1x1xf32>
      %cst_57 = arith.constant 0.000000e+00 : f32
      %79 = vector.broadcast %cst_57 : f32 to vector<1x1xf32>
      %80 = arith.subf %79, %78 : vector<1x1xf32>
      %81 = arith.divf %80, %71 : vector<1x1xf32>
      %c0_58 = arith.constant 0 : index
      %c0_59 = arith.constant 0 : index
      %82 = vector.load %arg9[%c0_58, %c0_59] : memref<1x1xf32, #tpu.memory_space<vmem>>, vector<1x1xf32>
      %c0_60 = arith.constant 0 : index
      %c0_61 = arith.constant 0 : index
      %83 = vector.load %arg10[%c0_60, %c0_61] : memref<1x1xf32, #tpu.memory_space<vmem>>, vector<1x1xf32>
      %84 = arith.addf %82, %83 : vector<1x1xf32>
      %cst_62 = arith.constant 0.000000e+00 : f32
      %85 = vector.broadcast %cst_62 : f32 to vector<1x1xf32>
      %86 = arith.subf %85, %84 : vector<1x1xf32>
      %87 = arith.addf %74, %77 : vector<1x1xf32>
      %88 = arith.divf %86, %87 : vector<1x1xf32>
      %cst_63 = arith.constant 5.000000e-01 : f32
      %89 = vector.broadcast %cst_63 : f32 to vector<1x1xf32>
      %90 = arith.mulf %89, %81 : vector<1x1xf32>
      %cst_64 = arith.constant 5.000000e-01 : f32
      %91 = vector.broadcast %cst_64 : f32 to vector<1x1xf32>
      %92 = arith.mulf %91, %88 : vector<1x1xf32>
      %93 = arith.addf %90, %92 : vector<1x1xf32>
      %94 = arith.addf %74, %77 : vector<1x1xf32>
      %cst_65 = arith.constant 5.000000e-01 : f32
      %95 = vector.broadcast %cst_65 : f32 to vector<1x1xf32>
      %96 = arith.mulf %95, %94 : vector<1x1xf32>
      %97 = tpu.iota {dimensions = array<i32: 1>} : vector<1x128xi32>
      %cst_66 = arith.constant 0.000000e+00 : f32
      %98 = vector.broadcast %cst_66 : f32 to vector<1x128xf32>
      %c0_i32_67 = arith.constant 0 : i32
      %99 = vector.broadcast %c0_i32_67 : i32 to vector<1x128xi32>
      %100 = arith.cmpi eq, %97, %99 : vector<1x128xi32>
      %101 = vector.shape_cast %93 : vector<1x1xf32> to vector<1x1xf32>
      %102 = vector.broadcast %101 : vector<1x1xf32> to vector<1x128xf32>
      %103 = arith.select %100, %102, %98 : vector<1x128xi1>, vector<1x128xf32>
      %c1_i32 = arith.constant 1 : i32
      %104 = vector.broadcast %c1_i32 : i32 to vector<1x128xi32>
      %105 = arith.cmpi eq, %97, %104 : vector<1x128xi32>
      %106 = vector.shape_cast %81 : vector<1x1xf32> to vector<1x1xf32>
      %107 = vector.broadcast %106 : vector<1x1xf32> to vector<1x128xf32>
      %108 = arith.select %105, %107, %103 : vector<1x128xi1>, vector<1x128xf32>
      %c2_i32 = arith.constant 2 : i32
      %109 = vector.broadcast %c2_i32 : i32 to vector<1x128xi32>
      %110 = arith.cmpi eq, %97, %109 : vector<1x128xi32>
      %111 = vector.shape_cast %88 : vector<1x1xf32> to vector<1x1xf32>
      %112 = vector.broadcast %111 : vector<1x1xf32> to vector<1x128xf32>
      %113 = arith.select %110, %112, %108 : vector<1x128xi1>, vector<1x128xf32>
      %c3_i32 = arith.constant 3 : i32
      %114 = vector.broadcast %c3_i32 : i32 to vector<1x128xi32>
      %115 = arith.cmpi eq, %97, %114 : vector<1x128xi32>
      %116 = vector.shape_cast %71 : vector<1x1xf32> to vector<1x1xf32>
      %117 = vector.broadcast %116 : vector<1x1xf32> to vector<1x128xf32>
      %118 = arith.select %115, %117, %113 : vector<1x128xi1>, vector<1x128xf32>
      %c4_i32 = arith.constant 4 : i32
      %119 = vector.broadcast %c4_i32 : i32 to vector<1x128xi32>
      %120 = arith.cmpi eq, %97, %119 : vector<1x128xi32>
      %121 = vector.shape_cast %96 : vector<1x1xf32> to vector<1x1xf32>
      %122 = vector.broadcast %121 : vector<1x1xf32> to vector<1x128xf32>
      %123 = arith.select %120, %122, %118 : vector<1x128xi1>, vector<1x128xf32>
      %c0_68 = arith.constant 0 : index
      %c0_69 = arith.constant 0 : index
      %c0_70 = arith.constant 0 : index
      %124 = vector.load %arg4[%c0_68, %c0_69, %c0_70] : memref<1x1x128xf32, #tpu.memory_space<vmem>>, vector<1x1x128xf32>
      %125 = vector.shape_cast %124 : vector<1x1x128xf32> to vector<1x128xf32>
      %126 = vector.shape_cast %123 : vector<1x128xf32> to vector<1x1x128xf32>
      tpu.vector_store %arg4[%c0_68, %c0_69, %c0_70], %126 {strides = array<i32>} : memref<1x1x128xf32, #tpu.memory_space<vmem>>, vector<1x1x128xf32>,
    } else {
    }
    return
  }
  func.func @transform_0(%arg0: i32, %arg1: i32) -> (i32, i32, i32) {
    %c0_i32 = arith.constant 0 : i32
    %c0_i32_0 = arith.constant 0 : i32
    return %arg0, %arg1, %c0_i32 : i32, i32, i32
  }
  func.func @transform_1(%arg0: i32, %arg1: i32) -> (i32, i32, i32) {
    %c0_i32 = arith.constant 0 : i32
    %c0_i32_0 = arith.constant 0 : i32
    return %arg0, %arg1, %c0_i32 : i32, i32, i32
  }
  func.func @transform_2(%arg0: i32, %arg1: i32) -> (i32, i32, i32) {
    %c0_i32 = arith.constant 0 : i32
    %c0_i32_0 = arith.constant 0 : i32
    %c0_i32_1 = arith.constant 0 : i32
    return %arg0, %c0_i32, %c0_i32_0 : i32, i32, i32
  }
}

</mosaic_0001>

<llo_original>
// kernel: tpu_custom_call.1
$region0: #{tpu_custom_call.1}
  #allocation0 [shape = 'u32[]', space=smem, size = 0x4, offset = 0x4, fixed_abs, tag = 'smem constant byte address 0x4 - core index']
  #allocation1 [shape = 'u32[144,128]{1,0:T(1,128)}', space=vmem, size = 0x12000, scoped, tag = 'internal scratch']
  #allocation2 [shape = 'f32[1,1]{1,0:T(1,128)}', space=vmem, size = 0x200, scoped, tag = 'scratch operand']
  #allocation3 [shape = 'f32[1,1]{1,0:T(1,128)}', space=vmem, size = 0x200, scoped, tag = 'scratch operand']
  #allocation4 [shape = 'f32[1,1]{1,0:T(1,128)}', space=vmem, size = 0x200, scoped, tag = 'scratch operand']
  #allocation5 [shape = 'f32[1,1]{1,0:T(1,128)}', space=vmem, size = 0x200, scoped, tag = 'scratch operand']
  #allocation6 [shape = 'f32[1,1]{1,0:T(1,128)}', space=vmem, size = 0x200, scoped, tag = 'scratch operand']
  #allocation7 [shape = 'f32[1,1]{1,0:T(1,128)}', space=vmem, size = 0x200, scoped, tag = 'scratch operand']
  %s0 = inlined_call_operand.hbm [shape: f32[2,16,32], index: 0, kind: input, shape index: {}]
  %s1 = inlined_call_operand.hbm [shape: f32[2,16,32], index: 1, kind: input, shape index: {}]
  %s2 = inlined_call_operand.hbm [shape: f32[2,1,128], index: 2, kind: output, shape index: {}]
  %s3 = sld [smem:[#allocation0]]
  $region57: #{tpu_custom_call.1} parent=0
    _
  %s5 = ssub.s32 1, %s3
  %s6 = scalar_select 0, %s5, %s3
  $region1: #{tpu_custom_call.1} parent=0
    #allocation8 [shape = 'u8[16384]{0}', space=vmem, size = 0x4000, scoped, tag = 'input window, operand 0']
    #allocation9 [shape = 's32[2]{0}', space=sflag, size = 0x8, scoped, tag = 'scoped memory for tpu_custom_call.1']
    #allocation10 [shape = 's32[2]{0}', space=sflag, size = 0x8, scoped, tag = 'scoped memory for tpu_custom_call.1']
    #allocation11 [shape = 'u8[16384]{0}', space=vmem, size = 0x4000, scoped, tag = 'input window, operand 1']
    #allocation12 [shape = 's32[2]{0}', space=sflag, size = 0x8, scoped, tag = 'scoped memory for tpu_custom_call.1']
    #allocation13 [shape = 'u8[1024]{0}', space=vmem, size = 0x400, scoped, tag = 'output window, operand 0']
    %7 = vsyncpa [#allocation9], 0
    %s8 = scalar_lea.sflag [#allocation9], 1
    %9 = vsyncpa %s8, 0
    %10 = vsyncpa [#allocation12], 0
    %s11 = scalar_lea.sflag [#allocation12], 1
    %12 = vsyncpa %s11, 0
    %13 = vsyncpa [#allocation10], 0
    %s14 = scalar_lea.sflag [#allocation10], 1
    %15 = vsyncpa %s14, 0
    loop: start=0, step=1, limit=4
    $region2: #{tpu_custom_call.1} parent=1 // loop_pre_header
      _
    $region3: #{tpu_custom_call.1} parent=1 // loop_header
      %s17 = sphi 0, %s21
      %p18 = scmp.ge.s32.totalorder %s17, 4
      %s24 = sphi 0, %s36
      %s25 = sphi 0, %s32
      %s26 = sphi 0, %s24
      %s27 = sphi 0, %s25
      %s28 = sphi 0, %s26
      %s29 = sphi 0, %s27
      %s41 = sphi 0, %s43
      %s44 = sphi 0, %s41
      %s45 = sphi 0, %s44
      %s61 = sphi 0, %s45
      %s69 = sphi 0, %s71
      %s72 = sphi 0, %s69
      %s73 = sphi 0, %s72
      %s89 = sphi 0, %s73
      %s95 = sphi 0, %s97
      %s98 = sphi 0, %s95
      %s99 = sphi 0, %s98
      %s115 = sphi 0, %s99
    $region4: #{tpu_custom_call.1} parent=1 // loop_header_branch
      %20 = sbr.rel (%p18) target = $region8
    $region5: #{tpu_custom_call.1} parent=1 // loop_body
      %s22 = ssub.s32 %s17, 1
      %s23 = ssub.s32 %s17, 2
      %s30 = sadd.s32 1, %s25
      %p31 = scmp.ge.s32.totalorder %s30, 1
      %s32 = scalar_select %p31, 0, %s30
      %s33 = sadd.s32 1, %s24
      %s34 = scalar_select %p31, %s33, %s24
      %p35 = scmp.ge.s32.totalorder %s34, 2
      %s36 = scalar_select %p35, 0, %s34
      %s37 = ssub.s32 %s24, %s36
      %s38 = ssub.s32 %s25, %s32
      %s39 = sor.u32 %s37, %s38
      %p40 = scmp.eq.s32.totalorder %s39, 0
      %s42 = sadd.s32 %s41, 1
      %s43 = scalar_select %p40, %s41, %s42
      %p46 = pneg %p40
      %p47 = scmp.eq.s32.totalorder %s17, 1
      %p48 = por %p46, %p47
      %p49 = scmp.ne.s32.totalorder %s41, %s44
      %p50 = scmp.eq.s32.totalorder %s17, 0
      %p51 = por %p49, %p50
      %p52 = scmp.ne.s32.totalorder %s41, %s44
      %p53 = scmp.eq.s32.totalorder %s22, 1
      %p54 = por %p52, %p53
      %p55 = scmp.ne.s32.totalorder %s44, %s45
      %p56 = scmp.eq.s32.totalorder %s22, 0
      %p57 = por %p55, %p56
      %p58 = scmp.ne.s32.totalorder %s44, %s45
      %p59 = scmp.eq.s32.totalorder %s23, 1
      %p60 = por %p58, %p59
      %p62 = scmp.ne.s32.totalorder %s45, %s61
      %p63 = scmp.eq.s32.totalorder %s23, 0
      %p64 = por %p62, %p63
      %s65 = ssub.s32 %s24, %s36
      %s66 = ssub.s32 %s25, %s32
      %s67 = sor.u32 %s65, %s66
      %p68 = scmp.eq.s32.totalorder %s67, 0
      %s70 = sadd.s32 %s69, 1
      %s71 = scalar_select %p68, %s69, %s70
      %p74 = pneg %p68
      %p75 = scmp.eq.s32.totalorder %s17, 1
      %p76 = por %p74, %p75
      %p77 = scmp.ne.s32.totalorder %s69, %s72
      %p78 = scmp.eq.s32.totalorder %s17, 0
      %p79 = por %p77, %p78
      %p80 = scmp.ne.s32.totalorder %s69, %s72
      %p81 = scmp.eq.s32.totalorder %s22, 1
      %p82 = por %p80, %p81
      %p83 = scmp.ne.s32.totalorder %s72, %s73
      %p84 = scmp.eq.s32.totalorder %s22, 0
      %p85 = por %p83, %p84
      %p86 = scmp.ne.s32.totalorder %s72, %s73
      %p87 = scmp.eq.s32.totalorder %s23, 1
      %p88 = por %p86, %p87
      %p90 = scmp.ne.s32.totalorder %s73, %s89
      %p91 = scmp.eq.s32.totalorder %s23, 0
      %p92 = por %p90, %p91
      %s93 = ssub.s32 %s24, %s36
      %p94 = scmp.eq.s32.totalorder %s93, 0
      %s96 = sadd.s32 %s95, 1
      %s97 = scalar_select %p94, %s95, %s96
      %p100 = pneg %p94
      %p101 = scmp.eq.s32.totalorder %s17, 1
      %p102 = por %p100, %p101
      %p103 = scmp.ne.s32.totalorder %s95, %s98
      %p104 = scmp.eq.s32.totalorder %s17, 0
      %p105 = por %p103, %p104
      %p106 = scmp.ne.s32.totalorder %s95, %s98
      %p107 = scmp.eq.s32.totalorder %s22, 1
      %p108 = por %p106, %p107
      %p109 = scmp.ne.s32.totalorder %s98, %s99
      %p110 = scmp.eq.s32.totalorder %s22, 0
      %p111 = por %p109, %p110
      %p112 = scmp.ne.s32.totalorder %s98, %s99
      %p113 = scmp.eq.s32.totalorder %s23, 1
      %p114 = por %p112, %p113
      %p116 = scmp.ne.s32.totalorder %s99, %s115
      %p117 = scmp.eq.s32.totalorder %s23, 0
      %p118 = por %p116, %p117
      %p119 = scmp.le.s32.totalorder 1, %s17
      %p120 = scmp.lt.s32.totalorder %s17, 3
      %p121 = pnand %p119, %p120
      %p122 = pneg %p121
      // Predicated region
      $region9: #{tpu_custom_call.1} parent=5 // pred_check
        _
      $region10: #{tpu_custom_call.1} parent=5 // pred_check_branch
        %124 = sbr.rel (%p121) target = $region12
      $region11: #{tpu_custom_call.1} parent=5 // pred_region
        %s125 = ssub.s32 %s17, 1
      $region12: #{tpu_custom_call.1} parent=5 // pred_fallthru
        _
      %p126 = scmp.lt.s32.totalorder %s17, 2
      // Predicated region
      $region13: #{tpu_custom_call.1} parent=5 // pred_check
        %p127 = pneg %p126
      $region14: #{tpu_custom_call.1} parent=5 // pred_check_branch
        %129 = sbr.rel (%p127) target = $region16
      $region15: #{tpu_custom_call.1} parent=5 // pred_region
        // Predicated region
        $region17: #{tpu_custom_call.1} parent=15 // pred_check
          %p130 = pneg %p51
        $region18: #{tpu_custom_call.1} parent=15 // pred_check_branch
          %132 = sbr.rel (%p130) target = $region20
        $region19: #{tpu_custom_call.1} parent=15 // pred_region
          %s133 = sand.u32 %s41, 1
          %s134 = scalar_lea.sflag [#allocation9], %s133
          %s135 = sand.u32 %s41, 1
          %s136 = smul.addr %s135, 16
          %s137 = scalar_lea.vmem [#allocation8], %s136
          %s138 = smul.u32 2, %s25
          %s140 = ssub.s32 256, 256
          %141 = vsyncadd %s134, %s140
          %s142 = smul.addr %s24, 2
          %s143 = sadd.s32 %s138, %s142
          %s144 = smul.addr %s143, 128
          %s145 = scalar_lea.hbm %s0, %s144
          %s146 = sshll.u32 %s137, 4
          %s147 = int_to_ptr.vmem [resolvable:$true] %s146
          %152 = dma.hbm_to_vmem [thread:$0]  %s145, 256, %s147, %s134, 128, 128, 8
        $region20: #{tpu_custom_call.1} parent=15 // pred_fallthru
          _
        // Predicated region
        $region21: #{tpu_custom_call.1} parent=15 // pred_check
          %p153 = pneg %p79
        $region22: #{tpu_custom_call.1} parent=15 // pred_check_branch
          %155 = sbr.rel (%p153) target = $region24
        $region23: #{tpu_custom_call.1} parent=15 // pred_region
          %s156 = sand.u32 %s69, 1
          %s157 = scalar_lea.sflag [#allocation12], %s156
          %s158 = sand.u32 %s69, 1
          %s159 = smul.addr %s158, 16
          %s160 = scalar_lea.vmem [#allocation11], %s159
          %s161 = smul.u32 2, %s25
          %s163 = ssub.s32 256, 256
          %164 = vsyncadd %s157, %s163
          %s165 = smul.addr %s24, 2
          %s166 = sadd.s32 %s161, %s165
          %s167 = smul.addr %s166, 128
          %s168 = scalar_lea.hbm %s1, %s167
          %s169 = sshll.u32 %s160, 4
          %s170 = int_to_ptr.vmem [resolvable:$true] %s169
          %175 = dma.hbm_to_vmem [thread:$0]  %s168, 256, %s170, %s157, 128, 128, 8
        $region24: #{tpu_custom_call.1} parent=15 // pred_fallthru
          _
      $region16: #{tpu_custom_call.1} parent=5 // pred_fallthru
        _
      %p176 = scmp.le.s32.totalorder 1, %s17
      %p177 = scmp.lt.s32.totalorder %s17, 3
      %p178 = pnand %p176, %p177
      %p179 = pneg %p178
      // Predicated region
      $region25: #{tpu_custom_call.1} parent=5 // pred_check
        _
      $region26: #{tpu_custom_call.1} parent=5 // pred_check_branch
        %181 = sbr.rel (%p178) target = $region28
      $region27: #{tpu_custom_call.1} parent=5 // pred_region
        %s182 = ssub.s32 %s17, 1
        %s183 = sand.u32 %s44, 1
        %s184 = scalar_lea.sflag [#allocation9], %s183
        %s185 = sand.u32 %s44, 1
        %s186 = smul.addr %s185, 16
        %s187 = scalar_lea.vmem [#allocation8], %s186
        // Predicated region
        $region29: #{tpu_custom_call.1} parent=27 // pred_check
          %p188 = pneg %p57
        $region30: #{tpu_custom_call.1} parent=27 // pred_check_branch
          %190 = sbr.rel (%p188) target = $region32
        $region31: #{tpu_custom_call.1} parent=27 // pred_region
          %191 = dma.done %s184, 256
        $region32: #{tpu_custom_call.1} parent=27 // pred_fallthru
          _
        %s192 = sand.u32 %s72, 1
        %s193 = scalar_lea.sflag [#allocation12], %s192
        %s194 = sand.u32 %s72, 1
        %s195 = smul.addr %s194, 16
        %s196 = scalar_lea.vmem [#allocation11], %s195
        // Predicated region
        $region33: #{tpu_custom_call.1} parent=27 // pred_check
          %p197 = pneg %p85
        $region34: #{tpu_custom_call.1} parent=27 // pred_check_branch
          %199 = sbr.rel (%p197) target = $region36
        $region35: #{tpu_custom_call.1} parent=27 // pred_region
          %200 = dma.done %s193, 256
        $region36: #{tpu_custom_call.1} parent=27 // pred_fallthru
          _
        %s201 = sand.u32 %s44, 1
        %s202 = scalar_lea.sflag [#allocation9], %s201
        %s203 = sand.u32 %s44, 1
        %s204 = smul.addr %s203, 16
        %s205 = scalar_lea.vmem [#allocation8], %s204
        %p206 = pneg %p57
        %p207 = pneg %p54
        %s208 = sand.u32 %s72, 1
        %s209 = scalar_lea.sflag [#allocation12], %s208
        %s210 = sand.u32 %s72, 1
        %s211 = smul.addr %s210, 16
        %s212 = scalar_lea.vmem [#allocation11], %s211
        %p213 = pneg %p85
        %p214 = pneg %p82
        %p215 = pneg %p111
        %p216 = pneg %p108
        %s217 = sand.u32 %s98, 1
        %s218 = scalar_lea.sflag [#allocation10], %s217
        %s219 = sand.u32 %s98, 1
        %s220 = scalar_lea.vmem [#allocation13], %s219
        %s221 = smul.u32 2, %s27
        %s222 = smul.u32 2, %s27
        %p223 = scmp.eq.s32.totalorder %s27, 0
        // Predicated region
        $region37: #{tpu_custom_call.1} parent=27 // pred_check
          %p224 = pneg %p223
        $region38: #{tpu_custom_call.1} parent=27 // pred_check_branch
          %226 = sbr.rel (%p224) target = $region40
        $region39: #{tpu_custom_call.1} parent=27 // pred_region
          %vm227 = vcmask 0
          %228 = vst.msk [vmem:[#allocation2] sm:$0x1] %vm227, 0.0
          %229 = vst.msk [vmem:[#allocation3] sm:$0x1] %vm227, 0.0
          %230 = vst.msk [vmem:[#allocation4] sm:$0x1] %vm227, 0.0
          %231 = vst.msk [vmem:[#allocation5] sm:$0x1] %vm227, 0.0
          %232 = vst.msk [vmem:[#allocation6] sm:$0x1] %vm227, 0.0
          %233 = vst.msk [vmem:[#allocation7] sm:$0x1] %vm227, 0.0
        $region40: #{tpu_custom_call.1} parent=27 // pred_fallthru
          _
        %v234 = vld [vmem:[%s187] sm:$0xff]
        %v235 = vld [vmem:[%s187 + $0x8] sm:$0xff]
        %v236 = vld [vmem:[%s196] sm:$0xff]
        %v237 = vld [vmem:[%s196 + $0x8] sm:$0xff]
        %v238 = vmul.f32 %v234, %v236
        %v239 = vmul.f32 %v235, %v237
        %vm240 = vcmask 261120
        %v241 = vsel %vm240, %v236, 0.0
        %242 = vadd.xlane.f32.xlu0 %v241
        %v243 = vpop.xlane.xlu0 %242
        %v244 = vsel %vm240, %v237, 0.0
        %245 = vadd.xlane.f32.xlu0 %v244
        %v246 = vpop.xlane.xlu0 %245
        %v247 = vsel %vm240, %v238, 0.0
        %248 = vadd.xlane.f32.xlu0 %v247
        %v249 = vpop.xlane.xlu0 %248
        %v250 = vsel %vm240, %v239, 0.0
        %251 = vadd.xlane.f32.xlu0 %v250
        %v252 = vpop.xlane.xlu0 %251
        %v253 = vsub.f32 %v243, %v236
        %v254 = vsub.f32 %v246, %v237
        %v255 = vsub.f32 %v249, %v238
        %v256 = vsub.f32 %v252, %v239
        %s257 = smul.u32 %s27, 16
        %v258 = vlaneseq
        %v259 = vshrl.u32 %v258, 7
        %v260 = vadd.s32 %v259, 8
        %v261 = vstv %s257
        %v262 = vadd.s32 %v261, %v259
        %v263 = vadd.s32 %v261, %v260
        %vm264 = vcmp.lt.s32.totalorder %v262, 15
        %vm265 = vcmp.lt.s32.totalorder %v263, 15
        %vm266 = vcmp.eq.s32.totalorder %v262, 15
        %vm267 = vcmp.eq.s32.totalorder %v263, 15
        %v268 = vld [vmem:[#allocation2] sm:$0x1]
        %v269 = vsel %vm264, %v253, 0.0
        %v270 = vsel %vm265, %v254, 0.0
        %vm271 = vcmask 261368
        %v272 = vsel %vm271, %v269, 0.0
        %v273 = vsel %vm271, %v270, 0.0
        %v274 = vadd.f32 %v272, %v273
        %v275 = vrot.slane %v274, 4
        %v276 = vadd.f32 %v274, %v275
        %v277 = vrot.slane %v276, 2
        %v278 = vadd.f32 %v276, %v277
        %v279 = vrot.slane %v278, 1
        %v280 = vadd.f32 %v278, %v279
        %v283 = vunpack.c.l.s4 1966171168
        %v284 = vunpack.c.0.s8 %v283
        %v285 = vlaneseq
        %v286 = vshrl.u32 %v285, 7
        %v287 = vsub.s32 %v284, %v286
        %v288 = vrot.slane %v280, %v287
        %v290 = vunpack.c.l.s4 1966171168
        %v291 = vunpack.c.0.s8 %v290
        %v292 = vlaneseq
        %v293 = vshrl.u32 %v292, 7
        %v294 = vsub.s32 %v291, %v293
        %v295 = vrot.slane %v288, %v294
        %296 = vrot.lane.b32.xlu0 %v295, 97
        %v297 = vpop.permute.xlu0 %296
        %v299 = vadd.f32 %v268, %v297
        %vm300 = vcmask 0
        %301 = vst.msk [vmem:[#allocation2] sm:$0x1] %vm300, %v299
        %v302 = vld [vmem:[#allocation5] sm:$0x1]
        %v303 = vsel %vm264, %v255, 0.0
        %v304 = vsel %vm265, %v256, 0.0
        %v305 = vsel %vm271, %v303, 0.0
        %v306 = vsel %vm271, %v304, 0.0
        %v307 = vadd.f32 %v305, %v306
        %v308 = vrot.slane %v307, 4
        %v309 = vadd.f32 %v307, %v308
        %v310 = vrot.slane %v309, 2
        %v311 = vadd.f32 %v309, %v310
        %v312 = vrot.slane %v311, 1
        %v313 = vadd.f32 %v311, %v312
        %v316 = vunpack.c.l.s4 1966171168
        %v317 = vunpack.c.0.s8 %v316
        %v318 = vlaneseq
        %v319 = vshrl.u32 %v318, 7
        %v320 = vsub.s32 %v317, %v319
        %v321 = vrot.slane %v313, %v320
        %v323 = vunpack.c.l.s4 1966171168
        %v324 = vunpack.c.0.s8 %v323
        %v325 = vlaneseq
        %v326 = vshrl.u32 %v325, 7
        %v327 = vsub.s32 %v324, %v326
        %v328 = vrot.slane %v321, %v327
        %329 = vrot.lane.b32.xlu0 %v328, 97
        %v330 = vpop.permute.xlu0 %329
        %v332 = vadd.f32 %v302, %v330
        %333 = vst.msk [vmem:[#allocation5] sm:$0x1] %vm300, %v332
        %v334 = vld [vmem:[#allocation3] sm:$0x1]
        %v335 = vsel %vm264, %v236, 0.0
        %v336 = vsel %vm265, %v237, 0.0
        %v337 = vsel %vm271, %v335, 0.0
        %v338 = vsel %vm271, %v336, 0.0
        %v339 = vadd.f32 %v337, %v338
        %v340 = vrot.slane %v339, 4
        %v341 = vadd.f32 %v339, %v340
        %v342 = vrot.slane %v341, 2
        %v343 = vadd.f32 %v341, %v342
        %v344 = vrot.slane %v343, 1
        %v345 = vadd.f32 %v343, %v344
        %v348 = vunpack.c.l.s4 1966171168
        %v349 = vunpack.c.0.s8 %v348
        %v350 = vlaneseq
        %v351 = vshrl.u32 %v350, 7
        %v352 = vsub.s32 %v349, %v351
        %v353 = vrot.slane %v345, %v352
        %v355 = vunpack.c.l.s4 1966171168
        %v356 = vunpack.c.0.s8 %v355
        %v357 = vlaneseq
        %v358 = vshrl.u32 %v357, 7
        %v359 = vsub.s32 %v356, %v358
        %v360 = vrot.slane %v353, %v359
        %361 = vrot.lane.b32.xlu0 %v360, 97
        %v362 = vpop.permute.xlu0 %361
        %v364 = vadd.f32 %v334, %v362
        %365 = vst.msk [vmem:[#allocation3] sm:$0x1] %vm300, %v364
        %v366 = vld [vmem:[#allocation6] sm:$0x1]
        %v367 = vsel %vm264, %v238, 0.0
        %v368 = vsel %vm265, %v239, 0.0
        %v369 = vsel %vm271, %v367, 0.0
        %v370 = vsel %vm271, %v368, 0.0
        %v371 = vadd.f32 %v369, %v370
        %v372 = vrot.slane %v371, 4
        %v373 = vadd.f32 %v371, %v372
        %v374 = vrot.slane %v373, 2
        %v375 = vadd.f32 %v373, %v374
        %v376 = vrot.slane %v375, 1
        %v377 = vadd.f32 %v375, %v376
        %v380 = vunpack.c.l.s4 1966171168
        %v381 = vunpack.c.0.s8 %v380
        %v382 = vlaneseq
        %v383 = vshrl.u32 %v382, 7
        %v384 = vsub.s32 %v381, %v383
        %v385 = vrot.slane %v377, %v384
        %v387 = vunpack.c.l.s4 1966171168
        %v388 = vunpack.c.0.s8 %v387
        %v389 = vlaneseq
        %v390 = vshrl.u32 %v389, 7
        %v391 = vsub.s32 %v388, %v390
        %v392 = vrot.slane %v385, %v391
        %393 = vrot.lane.b32.xlu0 %v392, 97
        %v394 = vpop.permute.xlu0 %393
        %v396 = vadd.f32 %v366, %v394
        %397 = vst.msk [vmem:[#allocation6] sm:$0x1] %vm300, %v396
        %v398 = vld [vmem:[#allocation4] sm:$0x1]
        %v399 = vsel %vm266, %v253, 0.0
        %v400 = vsel %vm267, %v254, 0.0
        %v401 = vsel %vm271, %v399, 0.0
        %v402 = vsel %vm271, %v400, 0.0
        %v403 = vadd.f32 %v401, %v402
        %v404 = vrot.slane %v403, 4
        %v405 = vadd.f32 %v403, %v404
        %v406 = vrot.slane %v405, 2
        %v407 = vadd.f32 %v405, %v406
        %v408 = vrot.slane %v407, 1
        %v409 = vadd.f32 %v407, %v408
        %v412 = vunpack.c.l.s4 1966171168
        %v413 = vunpack.c.0.s8 %v412
        %v414 = vlaneseq
        %v415 = vshrl.u32 %v414, 7
        %v416 = vsub.s32 %v413, %v415
        %v417 = vrot.slane %v409, %v416
        %v419 = vunpack.c.l.s4 1966171168
        %v420 = vunpack.c.0.s8 %v419
        %v421 = vlaneseq
        %v422 = vshrl.u32 %v421, 7
        %v423 = vsub.s32 %v420, %v422
        %v424 = vrot.slane %v417, %v423
        %425 = vrot.lane.b32.xlu0 %v424, 97
        %v426 = vpop.permute.xlu0 %425
        %v428 = vadd.f32 %v398, %v426
        %429 = vst.msk [vmem:[#allocation4] sm:$0x1] %vm300, %v428
        %v430 = vld [vmem:[#allocation7] sm:$0x1]
        %v431 = vsel %vm266, %v255, 0.0
        %v432 = vsel %vm267, %v256, 0.0
        %v433 = vsel %vm271, %v431, 0.0
        %v434 = vsel %vm271, %v432, 0.0
        %v435 = vadd.f32 %v433, %v434
        %v436 = vrot.slane %v435, 4
        %v437 = vadd.f32 %v435, %v436
        %v438 = vrot.slane %v437, 2
        %v439 = vadd.f32 %v437, %v438
        %v440 = vrot.slane %v439, 1
        %v441 = vadd.f32 %v439, %v440
        %v444 = vunpack.c.l.s4 1966171168
        %v445 = vunpack.c.0.s8 %v444
        %v446 = vlaneseq
        %v447 = vshrl.u32 %v446, 7
        %v448 = vsub.s32 %v445, %v447
        %v449 = vrot.slane %v441, %v448
        %v451 = vunpack.c.l.s4 1966171168
        %v452 = vunpack.c.0.s8 %v451
        %v453 = vlaneseq
        %v454 = vshrl.u32 %v453, 7
        %v455 = vsub.s32 %v452, %v454
        %v456 = vrot.slane %v449, %v455
        %457 = vrot.lane.b32.xlu0 %v456, 97
        %v458 = vpop.permute.xlu0 %457
        %v460 = vadd.f32 %v430, %v458
        %461 = vst.msk [vmem:[#allocation7] sm:$0x1] %vm300, %v460
        // Predicated region
        $region41: #{tpu_custom_call.1} parent=27 // pred_check
          %p462 = pneg %p223
        $region42: #{tpu_custom_call.1} parent=27 // pred_check_branch
          %464 = sbr.rel (%p462) target = $region44
        $region43: #{tpu_custom_call.1} parent=27 // pred_region
          %v465 = vld [vmem:[#allocation2] sm:$0x1]
          %v466 = vmax.f32 %v465, 1.0
          %v467 = vld [vmem:[#allocation3] sm:$0x1]
          %v468 = vmax.f32 %v467, 1.0
          %v469 = vld [vmem:[#allocation4] sm:$0x1]
          %v470 = vmax.f32 %v469, 1.0
          %v471 = vld [vmem:[#allocation5] sm:$0x1]
          %v472 = vsub.f32 0.0, %v471
          %v473 = vrcp.pop %v466
          %v474 = vmul.f32 %v472, %v473
          %v475 = vld [vmem:[#allocation6] sm:$0x1]
          %v476 = vld [vmem:[#allocation7] sm:$0x1]
          %v477 = vadd.f32 %v475, %v476
          %v478 = vsub.f32 0.0, %v477
          %v479 = vadd.f32 %v468, %v470
          %v480 = vrcp.pop %v479
          %v481 = vmul.f32 %v478, %v480
          %v482 = vmul.f32 %v474, 0.5
          %v483 = vmul.f32 %v481, 0.5
          %v484 = vadd.f32 %v482, %v483
          %v485 = vmul.f32 %v479, 0.5
          %v486 = vlaneseq
          %v487 = vand.u32 %v486, 127
          %vm488 = vcmp.eq.s32.totalorder %v487, 0
          %490 = vset.pattern.permute.xlu0 0
          %491 = vperm.xlu0 %490, %v484
          %v492 = vpop.permute.xlu0 %491
          %v494 = vlaneseq
          %v495 = vshrl.u32 %v494, 7
          %v496 = vsub.s32 0, %v495
          %v497 = vrot.slane %v492, %v496
          %v498 = vsel %vm488, %v497, 0.0
          %vm499 = vcmp.eq.s32.totalorder %v487, 1
          %501 = vset.pattern.permute.xlu0 0
          %502 = vperm.xlu0 %501, %v474
          %v503 = vpop.permute.xlu0 %502
          %v505 = vlaneseq
          %v506 = vshrl.u32 %v505, 7
          %v507 = vsub.s32 0, %v506
          %v508 = vrot.slane %v503, %v507
          %v509 = vsel %vm499, %v508, %v498
          %vm510 = vcmp.eq.s32.totalorder %v487, 2
          %512 = vset.pattern.permute.xlu0 0
          %513 = vperm.xlu0 %512, %v481
          %v514 = vpop.permute.xlu0 %513
          %v516 = vlaneseq
          %v517 = vshrl.u32 %v516, 7
          %v518 = vsub.s32 0, %v517
          %v519 = vrot.slane %v514, %v518
          %v520 = vsel %vm510, %v519, %v509
          %vm521 = vcmp.eq.s32.totalorder %v487, 3
          %523 = vset.pattern.permute.xlu0 0
          %524 = vperm.xlu0 %523, %v466
          %v525 = vpop.permute.xlu0 %524
          %v527 = vlaneseq
          %v528 = vshrl.u32 %v527, 7
          %v529 = vsub.s32 0, %v528
          %v530 = vrot.slane %v525, %v529
          %v531 = vsel %vm521, %v530, %v520
          %vm532 = vcmp.eq.s32.totalorder %v487, 4
          %534 = vset.pattern.permute.xlu0 0
          %535 = vperm.xlu0 %534, %v485
          %v536 = vpop.permute.xlu0 %535
          %v538 = vlaneseq
          %v539 = vshrl.u32 %v538, 7
          %v540 = vsub.s32 0, %v539
          %v541 = vrot.slane %v536, %v540
          %v542 = vsel %vm532, %v541, %v531
          %543 = vst [vmem:[%s220] sm:$0x1] %v542
        $region44: #{tpu_custom_call.1} parent=27 // pred_fallthru
          _
        %s544 = sand.u32 %s98, 1
        %s545 = scalar_lea.sflag [#allocation10], %s544
        %s546 = sand.u32 %s98, 1
        %s547 = scalar_lea.vmem [#allocation13], %s546
        // Predicated region
        $region45: #{tpu_custom_call.1} parent=27 // pred_check
          %p548 = pneg %p108
        $region46: #{tpu_custom_call.1} parent=27 // pred_check_branch
          %550 = sbr.rel (%p548) target = $region48
        $region47: #{tpu_custom_call.1} parent=27 // pred_region
          %s552 = ssub.s32 16, 16
          %553 = vsyncadd %s545, %s552
          %s554 = smul.addr %s26, 16
          %s555 = scalar_lea.hbm %s2, %s554
          %s557 = sshll.u32 %s547, 4
          %s558 = int_to_ptr.vmem [resolvable:$true] %s557
          %560 = dma.vmem_to_hbm [thread:$0]  %s558, 16, %s555, %s545
        $region48: #{tpu_custom_call.1} parent=27 // pred_fallthru
          _
      $region28: #{tpu_custom_call.1} parent=5 // pred_fallthru
        _
      %p561 = scmp.le.s32.totalorder 2, %s17
      // Predicated region
      $region49: #{tpu_custom_call.1} parent=5 // pred_check
        %p562 = pneg %p561
      $region50: #{tpu_custom_call.1} parent=5 // pred_check_branch
        %564 = sbr.rel (%p562) target = $region52
      $region51: #{tpu_custom_call.1} parent=5 // pred_region
        %s565 = ssub.s32 %s17, 2
        // Predicated region
        $region53: #{tpu_custom_call.1} parent=51 // pred_check
          %p566 = pneg %p114
        $region54: #{tpu_custom_call.1} parent=51 // pred_check_branch
          %568 = sbr.rel (%p566) target = $region56
        $region55: #{tpu_custom_call.1} parent=51 // pred_region
          %s569 = sand.u32 %s99, 1
          %s570 = scalar_lea.sflag [#allocation10], %s569
          %s571 = sand.u32 %s99, 1
          %s572 = scalar_lea.vmem [#allocation13], %s571
          %573 = dma.done %s570, 16
        $region56: #{tpu_custom_call.1} parent=51 // pred_fallthru
          _
      $region52: #{tpu_custom_call.1} parent=5 // pred_fallthru
        _
    $region6: #{tpu_custom_call.1} parent=1 // loop_footer
      %s21 = sadd.s32 1, %s17
    $region7: #{tpu_custom_call.1} parent=1 // loop_footer_branch
      %16 = sbr.rel target = $region3
    $region8: #{tpu_custom_call.1} parent=1 // loop_exit
      _
    %574 = vsyncpa [#allocation9], 1
    %s575 = scalar_lea.sflag [#allocation9], 1
    %576 = vsyncpa %s575, 1
    %577 = vsyncpa [#allocation12], 1
    %s578 = scalar_lea.sflag [#allocation12], 1
    %579 = vsyncpa %s578, 1
    %580 = vsyncpa [#allocation10], 1
    %s581 = scalar_lea.sflag [#allocation10], 1
    %582 = vsyncpa %s581, 1

</llo_original>
